<compile_context>
chip_gen: v6e
topology: v6e:2x2x1
jax: 0.10.0
libtpu: 0.0.40
codegen_flags: <defaults>
</compile_context>

<pallas_src>
import jax
import jax.numpy as jnp
from jax.experimental import pallas as pl
from jax.experimental.pallas import tpu as pltpu

LN_EPS = 1e-5
IN_F, HID_F, OUT_F = 4, 3, 5


def _dummy_kernel(x_ref, w0_ref, b0_ref, g_ref, be_ref, w1_ref, b1_ref, o_ref):
    # x_ref: (4, TB) VMEM tile (batch on lanes); params in SMEM; o_ref: (5, TB).
    x = [x_ref[k:k + 1, :] for k in range(IN_F)]             # 4 x (1, TB)

    # linear0: h_j = sum_k w0[j, k] * x_k + b0[j]   (VPU broadcast FMAs)
    h = []
    for j in range(HID_F):
        acc = x[0] * w0_ref[j, 0]
        for k in range(1, IN_F):
            acc = acc + x[k] * w0_ref[j, k]
        h.append(acc + b0_ref[j])

    # LayerNorm over the 3 hidden features (per lane column), biased variance.
    third = 1.0 / 3.0
    mu = (h[0] + h[1] + h[2]) * third
    d = [hj - mu for hj in h]
    var = (d[0] * d[0] + d[1] * d[1] + d[2] * d[2]) * third
    r = jax.lax.rsqrt(var + LN_EPS)                           # EUP slot
    t = [d[j] * r for j in range(HID_F)]                      # normalized (pre-affine)

    # linear1 with gamma/beta folded in (scalar-ALU folding, off the vector path):
    #   out_i = sum_j (w1[i,j]*gamma[j]) * t_j + (b1[i] + sum_j w1[i,j]*beta[j])
    for i in range(OUT_F):
        w_eff0 = w1_ref[i, 0] * g_ref[0]
        acc = t[0] * w_eff0
        bias = b1_ref[i] + w1_ref[i, 0] * be_ref[0]
        for j in range(1, HID_F):
            w_eff = w1_ref[i, j] * g_ref[j]
            acc = acc + t[j] * w_eff
            bias = bias + w1_ref[i, j] * be_ref[j]
        o_ref[i:i + 1, :] = (acc + bias).astype(o_ref.dtype)  # lane-dense row store


def _round_up(n, m):
    return ((n + m - 1) // m) * m


def dummy_module_forward(x, params, max_tile=2048):
    """x: (B, 4) float32. params in PyTorch layout (weight: (out,in), bias: (out,))."""
    B = x.shape[0]
    TB = min(max_tile, _round_up(max(B, 1), 128))             # lane tile, multiple of 128
    B_pad = _round_up(B, TB)

    # Batch onto the lane axis, zero-padded to a multiple of TB.
    x_t = jnp.zeros((IN_F, B_pad), x.dtype).at[:, :B].set(x.T)

    smem = pl.BlockSpec(memory_space=pltpu.MemorySpace.SMEM)

    out_t = pl.pallas_call(
        _dummy_kernel,
        out_shape=jax.ShapeDtypeStruct((OUT_F, B_pad), x.dtype),
        grid=(B_pad // TB,),
        in_specs=[
            pl.BlockSpec((IN_F, TB), lambda i: (0, i)),       # x tile
            smem, smem, smem, smem, smem, smem,               # w0, b0, gamma, beta, w1, b1
        ],
        out_specs=pl.BlockSpec((OUT_F, TB), lambda i: (0, i)),
        compiler_params=pltpu.CompilerParams(
            dimension_semantics=("parallel",)),
    )(x_t, params["w0"], params["b0"], params["gamma"], params["beta"],
      params["w1"], params["b1"])

    return out_t[:, :B].T                                     # (B, 5)


def init_params(key, dtype=jnp.float32):
    """Deterministic init mimicking nn.Linear / nn.LayerNorm defaults (PyTorch layout)."""
    k0w, k0b, k1w, k1b = jax.random.split(key, 4)
    bound0 = 1.0 / (IN_F ** 0.5)
    bound1 = 1.0 / (HID_F ** 0.5)
    w0 = jax.random.uniform(k0w, (HID_F, IN_F), dtype, -bound0, bound0)   # (3, 4)
    b0 = jax.random.uniform(k0b, (HID_F,), dtype, -bound0, bound0)        # (3,)
    w1 = jax.random.uniform(k1w, (OUT_F, HID_F), dtype, -bound1, bound1)  # (5, 3)
    b1 = jax.random.uniform(k1b, (OUT_F,), dtype, -bound1, bound1)        # (5,)
    gamma = jnp.ones((HID_F,), dtype)
    beta = jnp.zeros((HID_F,), dtype)
    return {"w0": w0, "b0": b0, "gamma": gamma, "beta": beta, "w1": w1, "b1": b1}


def reference_forward(x, p):
    h = x @ p["w0"].T + p["b0"]
    mu = jnp.mean(h, axis=-1, keepdims=True)
    var = jnp.mean((h - mu) ** 2, axis=-1, keepdims=True)
    hn = (h - mu) / jnp.sqrt(var + LN_EPS) * p["gamma"] + p["beta"]
    return hn @ p["w1"].T + p["b1"]


if __name__ == "__main__":
    key = jax.random.PRNGKey(0)
    kx, kp = jax.random.split(key)

    B = 8
    x = jax.random.normal(kx, (B, IN_F), jnp.float32)
    params = init_params(kp)

    fwd = jax.jit(dummy_module_forward)
    out = jax.block_until_ready(fwd(x, params))

    ref = reference_forward(x, params)
    assert out.shape == (B, OUT_F), out.shape
    assert jnp.allclose(out, ref, atol=1e-5, rtol=1e-5), "mismatch vs reference"

    print("KERNEL_OK")
</pallas_src>

<mosaic_0001>
module attributes {stable_mosaic.version = 11 : i64} {
  func.func @_dummy_kernel(%arg0: i32, %arg1: memref<4x128xf32, #tpu.memory_space<vmem>>, %arg2: memref<3x4xf32, #tpu.memory_space<smem>>, %arg3: memref<3xf32, #tpu.memory_space<smem>>, %arg4: memref<3xf32, #tpu.memory_space<smem>>, %arg5: memref<3xf32, #tpu.memory_space<smem>>, %arg6: memref<5x3xf32, #tpu.memory_space<smem>>, %arg7: memref<5xf32, #tpu.memory_space<smem>>, %arg8: memref<5x128xf32, #tpu.memory_space<vmem>>) attributes {dimension_semantics = [#tpu.dimension_semantics<parallel>], iteration_bounds = array<i64: 1>, scalar_prefetch = 0 : i64, scratch_operands = 0 : i64, tpu.core_type = #tpu.core_type<tc>, window_params = [{transform_indices = @transform_0, window_bounds = array<i64: 4, 128>}, {transform_indices = @transform_1, window_bounds = array<i64: 3, 4>}, {transform_indices = @transform_2, window_bounds = array<i64: 3>}, {transform_indices = @transform_3, window_bounds = array<i64: 3>}, {transform_indices = @transform_4, window_bounds = array<i64: 3>}, {transform_indices = @transform_5, window_bounds = array<i64: 5, 3>}, {transform_indices = @transform_6, window_bounds = array<i64: 5>}, {transform_indices = @transform_7, window_bounds = array<i64: 5, 128>}]} {
    %c0 = arith.constant 0 : index
    %c0_0 = arith.constant 0 : index
    %0 = vector.load %arg1[%c0, %c0_0] : memref<4x128xf32, #tpu.memory_space<vmem>>, vector<1x128xf32>
    %c1 = arith.constant 1 : index
    %c0_1 = arith.constant 0 : index
    %1 = vector.load %arg1[%c1, %c0_1] : memref<4x128xf32, #tpu.memory_space<vmem>>, vector<1x128xf32>
    %c2 = arith.constant 2 : index
    %c0_2 = arith.constant 0 : index
    %2 = vector.load %arg1[%c2, %c0_2] : memref<4x128xf32, #tpu.memory_space<vmem>>, vector<1x128xf32>
    %c3 = arith.constant 3 : index
    %c0_3 = arith.constant 0 : index
    %3 = vector.load %arg1[%c3, %c0_3] : memref<4x128xf32, #tpu.memory_space<vmem>>, vector<1x128xf32>
    %c0_4 = arith.constant 0 : index
    %c0_5 = arith.constant 0 : index
    %4 = memref.load %arg2[%c0_4, %c0_5] : memref<3x4xf32, #tpu.memory_space<smem>>
    %5 = vector.broadcast %4 : f32 to vector<1x128xf32>
    %6 = arith.mulf %0, %5 : vector<1x128xf32>
    %c0_6 = arith.constant 0 : index
    %c1_7 = arith.constant 1 : index
    %7 = memref.load %arg2[%c0_6, %c1_7] : memref<3x4xf32, #tpu.memory_space<smem>>
    %8 = vector.broadcast %7 : f32 to vector<1x128xf32>
    %9 = arith.mulf %1, %8 : vector<1x128xf32>
    %10 = arith.addf %6, %9 : vector<1x128xf32>
    %c0_8 = arith.constant 0 : index
    %c2_9 = arith.constant 2 : index
    %11 = memref.load %arg2[%c0_8, %c2_9] : memref<3x4xf32, #tpu.memory_space<smem>>
    %12 = vector.broadcast %11 : f32 to vector<1x128xf32>
    %13 = arith.mulf %2, %12 : vector<1x128xf32>
    %14 = arith.addf %10, %13 : vector<1x128xf32>
    %c0_10 = arith.constant 0 : index
    %c3_11 = arith.constant 3 : index
    %15 = memref.load %arg2[%c0_10, %c3_11] : memref<3x4xf32, #tpu.memory_space<smem>>
    %16 = vector.broadcast %15 : f32 to vector<1x128xf32>
    %17 = arith.mulf %3, %16 : vector<1x128xf32>
    %18 = arith.addf %14, %17 : vector<1x128xf32>
    %c0_12 = arith.constant 0 : index
    %19 = memref.load %arg3[%c0_12] : memref<3xf32, #tpu.memory_space<smem>>
    %20 = vector.broadcast %19 : f32 to vector<1x128xf32>
    %21 = arith.addf %18, %20 : vector<1x128xf32>
    %c1_13 = arith.constant 1 : index
    %c0_14 = arith.constant 0 : index
    %22 = memref.load %arg2[%c1_13, %c0_14] : memref<3x4xf32, #tpu.memory_space<smem>>
    %23 = vector.broadcast %22 : f32 to vector<1x128xf32>
    %24 = arith.mulf %0, %23 : vector<1x128xf32>
    %c1_15 = arith.constant 1 : index
    %c1_16 = arith.constant 1 : index
    %25 = memref.load %arg2[%c1_15, %c1_16] : memref<3x4xf32, #tpu.memory_space<smem>>
    %26 = vector.broadcast %25 : f32 to vector<1x128xf32>
    %27 = arith.mulf %1, %26 : vector<1x128xf32>
    %28 = arith.addf %24, %27 : vector<1x128xf32>
    %c1_17 = arith.constant 1 : index
    %c2_18 = arith.constant 2 : index
    %29 = memref.load %arg2[%c1_17, %c2_18] : memref<3x4xf32, #tpu.memory_space<smem>>
    %30 = vector.broadcast %29 : f32 to vector<1x128xf32>
    %31 = arith.mulf %2, %30 : vector<1x128xf32>
    %32 = arith.addf %28, %31 : vector<1x128xf32>
    %c1_19 = arith.constant 1 : index
    %c3_20 = arith.constant 3 : index
    %33 = memref.load %arg2[%c1_19, %c3_20] : memref<3x4xf32, #tpu.memory_space<smem>>
    %34 = vector.broadcast %33 : f32 to vector<1x128xf32>
    %35 = arith.mulf %3, %34 : vector<1x128xf32>
    %36 = arith.addf %32, %35 : vector<1x128xf32>
    %c1_21 = arith.constant 1 : index
    %37 = memref.load %arg3[%c1_21] : memref<3xf32, #tpu.memory_space<smem>>
    %38 = vector.broadcast %37 : f32 to vector<1x128xf32>
    %39 = arith.addf %36, %38 : vector<1x128xf32>
    %c2_22 = arith.constant 2 : index
    %c0_23 = arith.constant 0 : index
    %40 = memref.load %arg2[%c2_22, %c0_23] : memref<3x4xf32, #tpu.memory_space<smem>>
    %41 = vector.broadcast %40 : f32 to vector<1x128xf32>
    %42 = arith.mulf %0, %41 : vector<1x128xf32>
    %c2_24 = arith.constant 2 : index
    %c1_25 = arith.constant 1 : index
    %43 = memref.load %arg2[%c2_24, %c1_25] : memref<3x4xf32, #tpu.memory_space<smem>>
    %44 = vector.broadcast %43 : f32 to vector<1x128xf32>
    %45 = arith.mulf %1, %44 : vector<1x128xf32>
    %46 = arith.addf %42, %45 : vector<1x128xf32>
    %c2_26 = arith.constant 2 : index
    %c2_27 = arith.constant 2 : index
    %47 = memref.load %arg2[%c2_26, %c2_27] : memref<3x4xf32, #tpu.memory_space<smem>>
    %48 = vector.broadcast %47 : f32 to vector<1x128xf32>
    %49 = arith.mulf %2, %48 : vector<1x128xf32>
    %50 = arith.addf %46, %49 : vector<1x128xf32>
    %c2_28 = arith.constant 2 : index
    %c3_29 = arith.constant 3 : index
    %51 = memref.load %arg2[%c2_28, %c3_29] : memref<3x4xf32, #tpu.memory_space<smem>>
    %52 = vector.broadcast %51 : f32 to vector<1x128xf32>
    %53 = arith.mulf %3, %52 : vector<1x128xf32>
    %54 = arith.addf %50, %53 : vector<1x128xf32>
    %c2_30 = arith.constant 2 : index
    %55 = memref.load %arg3[%c2_30] : memref<3xf32, #tpu.memory_space<smem>>
    %56 = vector.broadcast %55 : f32 to vector<1x128xf32>
    %57 = arith.addf %54, %56 : vector<1x128xf32>
    %58 = arith.addf %21, %39 : vector<1x128xf32>
    %59 = arith.addf %58, %57 : vector<1x128xf32>
    %cst = arith.constant 0.333333343 : f32
    %60 = vector.broadcast %cst : f32 to vector<1x128xf32>
    %61 = arith.mulf %59, %60 : vector<1x128xf32>
    %62 = arith.subf %21, %61 : vector<1x128xf32>
    %63 = arith.subf %39, %61 : vector<1x128xf32>
    %64 = arith.subf %57, %61 : vector<1x128xf32>
    %65 = arith.mulf %62, %62 : vector<1x128xf32>
    %66 = arith.mulf %63, %63 : vector<1x128xf32>
    %67 = arith.addf %65, %66 : vector<1x128xf32>
    %68 = arith.mulf %64, %64 : vector<1x128xf32>
    %69 = arith.addf %67, %68 : vector<1x128xf32>
    %cst_31 = arith.constant 0.333333343 : f32
    %70 = vector.broadcast %cst_31 : f32 to vector<1x128xf32>
    %71 = arith.mulf %69, %70 : vector<1x128xf32>
    %cst_32 = arith.constant 9.99999974E-6 : f32
    %72 = vector.broadcast %cst_32 : f32 to vector<1x128xf32>
    %73 = arith.addf %71, %72 : vector<1x128xf32>
    %74 = math.rsqrt %73 : vector<1x128xf32>
    %75 = arith.mulf %62, %74 : vector<1x128xf32>
    %76 = arith.mulf %63, %74 : vector<1x128xf32>
    %77 = arith.mulf %64, %74 : vector<1x128xf32>
    %c0_33 = arith.constant 0 : index
    %c0_34 = arith.constant 0 : index
    %78 = memref.load %arg6[%c0_33, %c0_34] : memref<5x3xf32, #tpu.memory_space<smem>>
    %c0_35 = arith.constant 0 : index
    %79 = memref.load %arg4[%c0_35] : memref<3xf32, #tpu.memory_space<smem>>
    %80 = arith.mulf %78, %79 : f32
    %81 = vector.broadcast %80 : f32 to vector<1x128xf32>
    %82 = arith.mulf %75, %81 : vector<1x128xf32>
    %c0_36 = arith.constant 0 : index
    %83 = memref.load %arg7[%c0_36] : memref<5xf32, #tpu.memory_space<smem>>
    %c0_37 = arith.constant 0 : index
    %c0_38 = arith.constant 0 : index
    %84 = memref.load %arg6[%c0_37, %c0_38] : memref<5x3xf32, #tpu.memory_space<smem>>
    %c0_39 = arith.constant 0 : index
    %85 = memref.load %arg5[%c0_39] : memref<3xf32, #tpu.memory_space<smem>>
    %86 = arith.mulf %84, %85 : f32
    %87 = arith.addf %83, %86 : f32
    %c0_40 = arith.constant 0 : index
    %c1_41 = arith.constant 1 : index
    %88 = memref.load %arg6[%c0_40, %c1_41] : memref<5x3xf32, #tpu.memory_space<smem>>
    %c1_42 = arith.constant 1 : index
    %89 = memref.load %arg4[%c1_42] : memref<3xf32, #tpu.memory_space<smem>>
    %90 = arith.mulf %88, %89 : f32
    %91 = vector.broadcast %90 : f32 to vector<1x128xf32>
    %92 = arith.mulf %76, %91 : vector<1x128xf32>
    %93 = arith.addf %82, %92 : vector<1x128xf32>
    %c0_43 = arith.constant 0 : index
    %c1_44 = arith.constant 1 : index
    %94 = memref.load %arg6[%c0_43, %c1_44] : memref<5x3xf32, #tpu.memory_space<smem>>
    %c1_45 = arith.constant 1 : index
    %95 = memref.load %arg5[%c1_45] : memref<3xf32, #tpu.memory_space<smem>>
    %96 = arith.mulf %94, %95 : f32
    %97 = arith.addf %87, %96 : f32
    %c0_46 = arith.constant 0 : index
    %c2_47 = arith.constant 2 : index
    %98 = memref.load %arg6[%c0_46, %c2_47] : memref<5x3xf32, #tpu.memory_space<smem>>
    %c2_48 = arith.constant 2 : index
    %99 = memref.load %arg4[%c2_48] : memref<3xf32, #tpu.memory_space<smem>>
    %100 = arith.mulf %98, %99 : f32
    %101 = vector.broadcast %100 : f32 to vector<1x128xf32>
    %102 = arith.mulf %77, %101 : vector<1x128xf32>
    %103 = arith.addf %93, %102 : vector<1x128xf32>
    %c0_49 = arith.constant 0 : index
    %c2_50 = arith.constant 2 : index
    %104 = memref.load %arg6[%c0_49, %c2_50] : memref<5x3xf32, #tpu.memory_space<smem>>
    %c2_51 = arith.constant 2 : index
    %105 = memref.load %arg5[%c2_51] : memref<3xf32, #tpu.memory_space<smem>>
    %106 = arith.mulf %104, %105 : f32
    %107 = arith.addf %97, %106 : f32
    %108 = vector.broadcast %107 : f32 to vector<1x128xf32>
    %109 = arith.addf %103, %108 : vector<1x128xf32>
    %c0_52 = arith.constant 0 : index
    %c0_53 = arith.constant 0 : index
    %110 = vector.load %arg8[%c0_52, %c0_53] : memref<5x128xf32, #tpu.memory_space<vmem>>, vector<1x128xf32>
    tpu.vector_store %arg8[%c0_52, %c0_53], %109 {strides = array<i32>} : memref<5x128xf32, #tpu.memory_space<vmem>>, vector<1x128xf32>,
    %c1_54 = arith.constant 1 : index
    %c0_55 = arith.constant 0 : index
    %111 = memref.load %arg6[%c1_54, %c0_55] : memref<5x3xf32, #tpu.memory_space<smem>>
    %c0_56 = arith.constant 0 : index
    %112 = memref.load %arg4[%c0_56] : memref<3xf32, #tpu.memory_space<smem>>
    %113 = arith.mulf %111, %112 : f32
    %114 = vector.broadcast %113 : f32 to vector<1x128xf32>
    %115 = arith.mulf %75, %114 : vector<1x128xf32>
    %c1_57 = arith.constant 1 : index
    %116 = memref.load %arg7[%c1_57] : memref<5xf32, #tpu.memory_space<smem>>
    %c1_58 = arith.constant 1 : index
    %c0_59 = arith.constant 0 : index
    %117 = memref.load %arg6[%c1_58, %c0_59] : memref<5x3xf32, #tpu.memory_space<smem>>
    %c0_60 = arith.constant 0 : index
    %118 = memref.load %arg5[%c0_60] : memref<3xf32, #tpu.memory_space<smem>>
    %119 = arith.mulf %117, %118 : f32
    %120 = arith.addf %116, %119 : f32
    %c1_61 = arith.constant 1 : index
    %c1_62 = arith.constant 1 : index
    %121 = memref.load %arg6[%c1_61, %c1_62] : memref<5x3xf32, #tpu.memory_space<smem>>
    %c1_63 = arith.constant 1 : index
    %122 = memref.load %arg4[%c1_63] : memref<3xf32, #tpu.memory_space<smem>>
    %123 = arith.mulf %121, %122 : f32
    %124 = vector.broadcast %123 : f32 to vector<1x128xf32>
    %125 = arith.mulf %76, %124 : vector<1x128xf32>
    %126 = arith.addf %115, %125 : vector<1x128xf32>
    %c1_64 = arith.constant 1 : index
    %c1_65 = arith.constant 1 : index
    %127 = memref.load %arg6[%c1_64, %c1_65] : memref<5x3xf32, #tpu.memory_space<smem>>
    %c1_66 = arith.constant 1 : index
    %128 = memref.load %arg5[%c1_66] : memref<3xf32, #tpu.memory_space<smem>>
    %129 = arith.mulf %127, %128 : f32
    %130 = arith.addf %120, %129 : f32
    %c1_67 = arith.constant 1 : index
    %c2_68 = arith.constant 2 : index
    %131 = memref.load %arg6[%c1_67, %c2_68] : memref<5x3xf32, #tpu.memory_space<smem>>
    %c2_69 = arith.constant 2 : index
    %132 = memref.load %arg4[%c2_69] : memref<3xf32, #tpu.memory_space<smem>>
    %133 = arith.mulf %131, %132 : f32
    %134 = vector.broadcast %133 : f32 to vector<1x128xf32>
    %135 = arith.mulf %77, %134 : vector<1x128xf32>
    %136 = arith.addf %126, %135 : vector<1x128xf32>
    %c1_70 = arith.constant 1 : index
    %c2_71 = arith.constant 2 : index
    %137 = memref.load %arg6[%c1_70, %c2_71] : memref<5x3xf32, #tpu.memory_space<smem>>
    %c2_72 = arith.constant 2 : index
    %138 = memref.load %arg5[%c2_72] : memref<3xf32, #tpu.memory_space<smem>>
    %139 = arith.mulf %137, %138 : f32
    %140 = arith.addf %130, %139 : f32
    %141 = vector.broadcast %140 : f32 to vector<1x128xf32>
    %142 = arith.addf %136, %141 : vector<1x128xf32>
    %c1_73 = arith.constant 1 : index
    %c0_74 = arith.constant 0 : index
    %143 = vector.load %arg8[%c1_73, %c0_74] : memref<5x128xf32, #tpu.memory_space<vmem>>, vector<1x128xf32>
    tpu.vector_store %arg8[%c1_73, %c0_74], %142 {strides = array<i32>} : memref<5x128xf32, #tpu.memory_space<vmem>>, vector<1x128xf32>,
    %c2_75 = arith.constant 2 : index
    %c0_76 = arith.constant 0 : index
    %144 = memref.load %arg6[%c2_75, %c0_76] : memref<5x3xf32, #tpu.memory_space<smem>>
    %c0_77 = arith.constant 0 : index
    %145 = memref.load %arg4[%c0_77] : memref<3xf32, #tpu.memory_space<smem>>
    %146 = arith.mulf %144, %145 : f32
    %147 = vector.broadcast %146 : f32 to vector<1x128xf32>
    %148 = arith.mulf %75, %147 : vector<1x128xf32>
    %c2_78 = arith.constant 2 : index
    %149 = memref.load %arg7[%c2_78] : memref<5xf32, #tpu.memory_space<smem>>
    %c2_79 = arith.constant 2 : index
    %c0_80 = arith.constant 0 : index
    %150 = memref.load %arg6[%c2_79, %c0_80] : memref<5x3xf32, #tpu.memory_space<smem>>
    %c0_81 = arith.constant 0 : index
    %151 = memref.load %arg5[%c0_81] : memref<3xf32, #tpu.memory_space<smem>>
    %152 = arith.mulf %150, %151 : f32
    %153 = arith.addf %149, %152 : f32
    %c2_82 = arith.constant 2 : index
    %c1_83 = arith.constant 1 : index
    %154 = memref.load %arg6[%c2_82, %c1_83] : memref<5x3xf32, #tpu.memory_space<smem>>
    %c1_84 = arith.constant 1 : index
    %155 = memref.load %arg4[%c1_84] : memref<3xf32, #tpu.memory_space<smem>>
    %156 = arith.mulf %154, %155 : f32
    %157 = vector.broadcast %156 : f32 to vector<1x128xf32>
    %158 = arith.mulf %76, %157 : vector<1x128xf32>
    %159 = arith.addf %148, %158 : vector<1x128xf32>
    %c2_85 = arith.constant 2 : index
    %c1_86 = arith.constant 1 : index
    %160 = memref.load %arg6[%c2_85, %c1_86] : memref<5x3xf32, #tpu.memory_space<smem>>
    %c1_87 = arith.constant 1 : index
    %161 = memref.load %arg5[%c1_87] : memref<3xf32, #tpu.memory_space<smem>>
    %162 = arith.mulf %160, %161 : f32
    %163 = arith.addf %153, %162 : f32
    %c2_88 = arith.constant 2 : index
    %c2_89 = arith.constant 2 : index
    %164 = memref.load %arg6[%c2_88, %c2_89] : memref<5x3xf32, #tpu.memory_space<smem>>
    %c2_90 = arith.constant 2 : index
    %165 = memref.load %arg4[%c2_90] : memref<3xf32, #tpu.memory_space<smem>>
    %166 = arith.mulf %164, %165 : f32
    %167 = vector.broadcast %166 : f32 to vector<1x128xf32>
    %168 = arith.mulf %77, %167 : vector<1x128xf32>
    %169 = arith.addf %159, %168 : vector<1x128xf32>
    %c2_91 = arith.constant 2 : index
    %c2_92 = arith.constant 2 : index
    %170 = memref.load %arg6[%c2_91, %c2_92] : memref<5x3xf32, #tpu.memory_space<smem>>
    %c2_93 = arith.constant 2 : index
    %171 = memref.load %arg5[%c2_93] : memref<3xf32, #tpu.memory_space<smem>>
    %172 = arith.mulf %170, %171 : f32
    %173 = arith.addf %163, %172 : f32
    %174 = vector.broadcast %173 : f32 to vector<1x128xf32>
    %175 = arith.addf %169, %174 : vector<1x128xf32>
    %c2_94 = arith.constant 2 : index
    %c0_95 = arith.constant 0 : index
    %176 = vector.load %arg8[%c2_94, %c0_95] : memref<5x128xf32, #tpu.memory_space<vmem>>, vector<1x128xf32>
    tpu.vector_store %arg8[%c2_94, %c0_95], %175 {strides = array<i32>} : memref<5x128xf32, #tpu.memory_space<vmem>>, vector<1x128xf32>,
    %c3_96 = arith.constant 3 : index
    %c0_97 = arith.constant 0 : index
    %177 = memref.load %arg6[%c3_96, %c0_97] : memref<5x3xf32, #tpu.memory_space<smem>>
    %c0_98 = arith.constant 0 : index
    %178 = memref.load %arg4[%c0_98] : memref<3xf32, #tpu.memory_space<smem>>
    %179 = arith.mulf %177, %178 : f32
    %180 = vector.broadcast %179 : f32 to vector<1x128xf32>
    %181 = arith.mulf %75, %180 : vector<1x128xf32>
    %c3_99 = arith.constant 3 : index
    %182 = memref.load %arg7[%c3_99] : memref<5xf32, #tpu.memory_space<smem>>
    %c3_100 = arith.constant 3 : index
    %c0_101 = arith.constant 0 : index
    %183 = memref.load %arg6[%c3_100, %c0_101] : memref<5x3xf32, #tpu.memory_space<smem>>
    %c0_102 = arith.constant 0 : index
    %184 = memref.load %arg5[%c0_102] : memref<3xf32, #tpu.memory_space<smem>>
    %185 = arith.mulf %183, %184 : f32
    %186 = arith.addf %182, %185 : f32
    %c3_103 = arith.constant 3 : index
    %c1_104 = arith.constant 1 : index
    %187 = memref.load %arg6[%c3_103, %c1_104] : memref<5x3xf32, #tpu.memory_space<smem>>
    %c1_105 = arith.constant 1 : index
    %188 = memref.load %arg4[%c1_105] : memref<3xf32, #tpu.memory_space<smem>>
    %189 = arith.mulf %187, %188 : f32
    %190 = vector.broadcast %189 : f32 to vector<1x128xf32>
    %191 = arith.mulf %76, %190 : vector<1x128xf32>
    %192 = arith.addf %181, %191 : vector<1x128xf32>
    %c3_106 = arith.constant 3 : index
    %c1_107 = arith.constant 1 : index
    %193 = memref.load %arg6[%c3_106, %c1_107] : memref<5x3xf32, #tpu.memory_space<smem>>
    %c1_108 = arith.constant 1 : index
    %194 = memref.load %arg5[%c1_108] : memref<3xf32, #tpu.memory_space<smem>>
    %195 = arith.mulf %193, %194 : f32
    %196 = arith.addf %186, %195 : f32
    %c3_109 = arith.constant 3 : index
    %c2_110 = arith.constant 2 : index
    %197 = memref.load %arg6[%c3_109, %c2_110] : memref<5x3xf32, #tpu.memory_space<smem>>
    %c2_111 = arith.constant 2 : index
    %198 = memref.load %arg4[%c2_111] : memref<3xf32, #tpu.memory_space<smem>>
    %199 = arith.mulf %197, %198 : f32
    %200 = vector.broadcast %199 : f32 to vector<1x128xf32>
    %201 = arith.mulf %77, %200 : vector<1x128xf32>
    %202 = arith.addf %192, %201 : vector<1x128xf32>
    %c3_112 = arith.constant 3 : index
    %c2_113 = arith.constant 2 : index
    %203 = memref.load %arg6[%c3_112, %c2_113] : memref<5x3xf32, #tpu.memory_space<smem>>
    %c2_114 = arith.constant 2 : index
    %204 = memref.load %arg5[%c2_114] : memref<3xf32, #tpu.memory_space<smem>>
    %205 = arith.mulf %203, %204 : f32
    %206 = arith.addf %196, %205 : f32
    %207 = vector.broadcast %206 : f32 to vector<1x128xf32>
    %208 = arith.addf %202, %207 : vector<1x128xf32>
    %c3_115 = arith.constant 3 : index
    %c0_116 = arith.constant 0 : index
    %209 = vector.load %arg8[%c3_115, %c0_116] : memref<5x128xf32, #tpu.memory_space<vmem>>, vector<1x128xf32>
    tpu.vector_store %arg8[%c3_115, %c0_116], %208 {strides = array<i32>} : memref<5x128xf32, #tpu.memory_space<vmem>>, vector<1x128xf32>,
    %c4 = arith.constant 4 : index
    %c0_117 = arith.constant 0 : index
    %210 = memref.load %arg6[%c4, %c0_117] : memref<5x3xf32, #tpu.memory_space<smem>>
    %c0_118 = arith.constant 0 : index
    %211 = memref.load %arg4[%c0_118] : memref<3xf32, #tpu.memory_space<smem>>
    %212 = arith.mulf %210, %211 : f32
    %213 = vector.broadcast %212 : f32 to vector<1x128xf32>
    %214 = arith.mulf %75, %213 : vector<1x128xf32>
    %c4_119 = arith.constant 4 : index
    %215 = memref.load %arg7[%c4_119] : memref<5xf32, #tpu.memory_space<smem>>
    %c4_120 = arith.constant 4 : index
    %c0_121 = arith.constant 0 : index
    %216 = memref.load %arg6[%c4_120, %c0_121] : memref<5x3xf32, #tpu.memory_space<smem>>
    %c0_122 = arith.constant 0 : index
    %217 = memref.load %arg5[%c0_122] : memref<3xf32, #tpu.memory_space<smem>>
    %218 = arith.mulf %216, %217 : f32
    %219 = arith.addf %215, %218 : f32
    %c4_123 = arith.constant 4 : index
    %c1_124 = arith.constant 1 : index
    %220 = memref.load %arg6[%c4_123, %c1_124] : memref<5x3xf32, #tpu.memory_space<smem>>
    %c1_125 = arith.constant 1 : index
    %221 = memref.load %arg4[%c1_125] : memref<3xf32, #tpu.memory_space<smem>>
    %222 = arith.mulf %220, %221 : f32
    %223 = vector.broadcast %222 : f32 to vector<1x128xf32>
    %224 = arith.mulf %76, %223 : vector<1x128xf32>
    %225 = arith.addf %214, %224 : vector<1x128xf32>
    %c4_126 = arith.constant 4 : index
    %c1_127 = arith.constant 1 : index
    %226 = memref.load %arg6[%c4_126, %c1_127] : memref<5x3xf32, #tpu.memory_space<smem>>
    %c1_128 = arith.constant 1 : index
    %227 = memref.load %arg5[%c1_128] : memref<3xf32, #tpu.memory_space<smem>>
    %228 = arith.mulf %226, %227 : f32
    %229 = arith.addf %219, %228 : f32
    %c4_129 = arith.constant 4 : index
    %c2_130 = arith.constant 2 : index
    %230 = memref.load %arg6[%c4_129, %c2_130] : memref<5x3xf32, #tpu.memory_space<smem>>
    %c2_131 = arith.constant 2 : index
    %231 = memref.load %arg4[%c2_131] : memref<3xf32, #tpu.memory_space<smem>>
    %232 = arith.mulf %230, %231 : f32
    %233 = vector.broadcast %232 : f32 to vector<1x128xf32>
    %234 = arith.mulf %77, %233 : vector<1x128xf32>
    %235 = arith.addf %225, %234 : vector<1x128xf32>
    %c4_132 = arith.constant 4 : index
    %c2_133 = arith.constant 2 : index
    %236 = memref.load %arg6[%c4_132, %c2_133] : memref<5x3xf32, #tpu.memory_space<smem>>
    %c2_134 = arith.constant 2 : index
    %237 = memref.load %arg5[%c2_134] : memref<3xf32, #tpu.memory_space<smem>>
    %238 = arith.mulf %236, %237 : f32
    %239 = arith.addf %229, %238 : f32
    %240 = vector.broadcast %239 : f32 to vector<1x128xf32>
    %241 = arith.addf %235, %240 : vector<1x128xf32>
    %c4_135 = arith.constant 4 : index
    %c0_136 = arith.constant 0 : index
    %242 = vector.load %arg8[%c4_135, %c0_136] : memref<5x128xf32, #tpu.memory_space<vmem>>, vector<1x128xf32>
    tpu.vector_store %arg8[%c4_135, %c0_136], %241 {strides = array<i32>} : memref<5x128xf32, #tpu.memory_space<vmem>>, vector<1x128xf32>,
    return
  }
  func.func @transform_0(%arg0: i32) -> (i32, i32) {
    %c0_i32 = arith.constant 0 : i32
    %c0_i32_0 = arith.constant 0 : i32
    return %c0_i32, %arg0 : i32, i32
  }
  func.func @transform_1(%arg0: i32) -> (i32, i32) {
    %c0_i32 = arith.constant 0 : i32
    %c0_i32_0 = arith.constant 0 : i32
    %c0_i32_1 = arith.constant 0 : i32
    return %c0_i32, %c0_i32_0 : i32, i32
  }
  func.func @transform_2(%arg0: i32) -> i32 {
    %c0_i32 = arith.constant 0 : i32
    %c0_i32_0 = arith.constant 0 : i32
    return %c0_i32 : i32
  }
  func.func @transform_3(%arg0: i32) -> i32 {
    %c0_i32 = arith.constant 0 : i32
    %c0_i32_0 = arith.constant 0 : i32
    return %c0_i32 : i32
  }
  func.func @transform_4(%arg0: i32) -> i32 {
    %c0_i32 = arith.constant 0 : i32
    %c0_i32_0 = arith.constant 0 : i32
    return %c0_i32 : i32
  }
  func.func @transform_5(%arg0: i32) -> (i32, i32) {
    %c0_i32 = arith.constant 0 : i32
    %c0_i32_0 = arith.constant 0 : i32
    %c0_i32_1 = arith.constant 0 : i32
    return %c0_i32, %c0_i32_0 : i32, i32
  }
  func.func @transform_6(%arg0: i32) -> i32 {
    %c0_i32 = arith.constant 0 : i32
    %c0_i32_0 = arith.constant 0 : i32
    return %c0_i32 : i32
  }
  func.func @transform_7(%arg0: i32) -> (i32, i32) {
    %c0_i32 = arith.constant 0 : i32
    %c0_i32_0 = arith.constant 0 : i32
    return %c0_i32, %arg0 : i32, i32
  }
}

</mosaic_0001>

<llo_original>
// kernel: dummy_module_forward.1
$region0: #{dummy_module_forward.1}
  #allocation0 [shape = 'u32[]', space=smem, size = 0x4, offset = 0x4, fixed_abs, tag = 'smem constant byte address 0x4 - core index']
  #allocation1 [shape = 'u32[144,128]{1,0:T(1,128)}', space=vmem, size = 0x12000, scoped, tag = 'internal scratch']
  %s0 = inlined_call_operand.vmem [shape: f32[4,128], index: 0, kind: input, shape index: {}]
  %s1 = inlined_call_operand.vmem [shape: f32[3,4], index: 1, kind: input, shape index: {}]
  %s2 = inlined_call_operand.vmem [shape: f32[3], index: 2, kind: input, shape index: {}]
  %s3 = inlined_call_operand.vmem [shape: f32[3], index: 3, kind: input, shape index: {}]
  %s4 = inlined_call_operand.vmem [shape: f32[3], index: 4, kind: input, shape index: {}]
  %s5 = inlined_call_operand.vmem [shape: f32[5,3], index: 5, kind: input, shape index: {}]
  %s6 = inlined_call_operand.vmem [shape: f32[5], index: 6, kind: input, shape index: {}]
  %s7 = inlined_call_operand.vmem [shape: f32[5,128], index: 7, kind: output, shape index: {}]
  %s8 = sld [smem:[#allocation0]]
  $region62: #{dummy_module_forward.1} parent=0
    _
  %s10 = ssub.s32 1, %s8
  %s11 = scalar_select 0, %s10, %s8
  $region1: #{dummy_module_forward.1} parent=0
    #allocation2 [shape = 'u8[2048]{0}', space=smem, size = 0x800, scoped, tag = 'input window, operand 1, single buffered']
    #allocation3 [shape = 's32[1]{0}', space=sflag, size = 0x4, scoped, tag = 'scoped memory for dummy_module_forward.1']
    #allocation4 [shape = 'u8[512]{0}', space=smem, size = 0x200, scoped, tag = 'input window, operand 2, single buffered']
    #allocation5 [shape = 's32[1]{0}', space=sflag, size = 0x4, scoped, tag = 'scoped memory for dummy_module_forward.1']
    #allocation6 [shape = 'u8[512]{0}', space=smem, size = 0x200, scoped, tag = 'input window, operand 3, single buffered']
    #allocation7 [shape = 'u8[512]{0}', space=smem, size = 0x200, scoped, tag = 'input window, operand 4, single buffered']
    #allocation8 [shape = 's32[1]{0}', space=sflag, size = 0x4, scoped, tag = 'scoped memory for dummy_module_forward.1']
    #allocation9 [shape = 'u8[4096]{0}', space=smem, size = 0x1000, scoped, tag = 'input window, operand 5, single buffered']
    #allocation10 [shape = 'u8[512]{0}', space=smem, size = 0x200, scoped, tag = 'input window, operand 6, single buffered']
    #allocation11 [shape = 's32[1]{0}', space=sflag, size = 0x4, scoped, tag = 'scoped memory for dummy_module_forward.1']
    %12 = vsyncpa [#allocation3], 0
    %13 = vsyncpa [#allocation5], 0
    %14 = vsyncpa [#allocation8], 0
    %15 = vsyncpa [#allocation11], 0
    // Predicated region
    $region2: #{dummy_module_forward.1} parent=1 // pred_check
      _
    $region3: #{dummy_module_forward.1} parent=1 // pred_check_branch
      %17 = sbr.rel (0) target = $region5
    $region4: #{dummy_module_forward.1} parent=1 // pred_region
      _
    $region5: #{dummy_module_forward.1} parent=1 // pred_fallthru
      _
    // Predicated region
    $region6: #{dummy_module_forward.1} parent=1 // pred_check
      _
    $region7: #{dummy_module_forward.1} parent=1 // pred_check_branch
      %19 = sbr.rel (0) target = $region9
    $region8: #{dummy_module_forward.1} parent=1 // pred_region
      %s21 = ssub.s32 64, 64
      %22 = vsyncadd [#allocation3], %s21
      %s24 = sshll.u32 %s1, 4
      %s25 = int_to_ptr.vmem [resolvable:$true] %s24
      %27 = dma.vmem_to_smem %s25, 64, [#allocation2], [#allocation3]
    $region9: #{dummy_module_forward.1} parent=1 // pred_fallthru
      _
    // Predicated region
    $region10: #{dummy_module_forward.1} parent=1 // pred_check
      _
    $region11: #{dummy_module_forward.1} parent=1 // pred_check_branch
      %29 = sbr.rel (0) target = $region13
    $region12: #{dummy_module_forward.1} parent=1 // pred_region
      %s31 = ssub.s32 16, 16
      %32 = vsyncadd [#allocation5], %s31
      %s34 = sshll.u32 %s2, 4
      %s35 = int_to_ptr.vmem [resolvable:$true] %s34
      %37 = dma.vmem_to_smem %s35, 16, [#allocation4], [#allocation5]
    $region13: #{dummy_module_forward.1} parent=1 // pred_fallthru
      _
    // Predicated region
    $region14: #{dummy_module_forward.1} parent=1 // pred_check
      _
    $region15: #{dummy_module_forward.1} parent=1 // pred_check_branch
      %39 = sbr.rel (0) target = $region17
    $region16: #{dummy_module_forward.1} parent=1 // pred_region
      %s41 = ssub.s32 16, 16
      %42 = vsyncadd [#allocation5], %s41
      %s44 = sshll.u32 %s3, 4
      %s45 = int_to_ptr.vmem [resolvable:$true] %s44
      %47 = dma.vmem_to_smem %s45, 16, [#allocation6], [#allocation5]
    $region17: #{dummy_module_forward.1} parent=1 // pred_fallthru
      _
    // Predicated region
    $region18: #{dummy_module_forward.1} parent=1 // pred_check
      _
    $region19: #{dummy_module_forward.1} parent=1 // pred_check_branch
      %49 = sbr.rel (0) target = $region21
    $region20: #{dummy_module_forward.1} parent=1 // pred_region
      %s51 = ssub.s32 16, 16
      %52 = vsyncadd [#allocation8], %s51
      %s54 = sshll.u32 %s4, 4
      %s55 = int_to_ptr.vmem [resolvable:$true] %s54
      %57 = dma.vmem_to_smem %s55, 16, [#allocation7], [#allocation8]
    $region21: #{dummy_module_forward.1} parent=1 // pred_fallthru
      _
    // Predicated region
    $region22: #{dummy_module_forward.1} parent=1 // pred_check
      _
    $region23: #{dummy_module_forward.1} parent=1 // pred_check_branch
      %59 = sbr.rel (0) target = $region25
    $region24: #{dummy_module_forward.1} parent=1 // pred_region
      %s61 = ssub.s32 128, 128
      %62 = vsyncadd [#allocation8], %s61
      %s64 = sshll.u32 %s5, 4
      %s65 = int_to_ptr.vmem [resolvable:$true] %s64
      %67 = dma.vmem_to_smem %s65, 128, [#allocation9], [#allocation8]
    $region25: #{dummy_module_forward.1} parent=1 // pred_fallthru
      _
    // Predicated region
    $region26: #{dummy_module_forward.1} parent=1 // pred_check
      _
    $region27: #{dummy_module_forward.1} parent=1 // pred_check_branch
      %69 = sbr.rel (0) target = $region29
    $region28: #{dummy_module_forward.1} parent=1 // pred_region
      %s71 = ssub.s32 16, 16
      %72 = vsyncadd [#allocation11], %s71
      %s74 = sshll.u32 %s6, 4
      %s75 = int_to_ptr.vmem [resolvable:$true] %s74
      %77 = dma.vmem_to_smem %s75, 16, [#allocation10], [#allocation11]
    $region29: #{dummy_module_forward.1} parent=1 // pred_fallthru
      _
    // Predicated region
    $region30: #{dummy_module_forward.1} parent=1 // pred_check
      _
    $region31: #{dummy_module_forward.1} parent=1 // pred_check_branch
      %79 = sbr.rel (0) target = $region33
    $region32: #{dummy_module_forward.1} parent=1 // pred_region
      %80 = dma.done [#allocation3], 64
    $region33: #{dummy_module_forward.1} parent=1 // pred_fallthru
      _
    // Predicated region
    $region34: #{dummy_module_forward.1} parent=1 // pred_check
      _
    $region35: #{dummy_module_forward.1} parent=1 // pred_check_branch
      %82 = sbr.rel (0) target = $region37
    $region36: #{dummy_module_forward.1} parent=1 // pred_region
      %83 = dma.done [#allocation5], 16
    $region37: #{dummy_module_forward.1} parent=1 // pred_fallthru
      _
    // Predicated region
    $region38: #{dummy_module_forward.1} parent=1 // pred_check
      _
    $region39: #{dummy_module_forward.1} parent=1 // pred_check_branch
      %85 = sbr.rel (0) target = $region41
    $region40: #{dummy_module_forward.1} parent=1 // pred_region
      %86 = dma.done [#allocation5], 16
    $region41: #{dummy_module_forward.1} parent=1 // pred_fallthru
      _
    // Predicated region
    $region42: #{dummy_module_forward.1} parent=1 // pred_check
      _
    $region43: #{dummy_module_forward.1} parent=1 // pred_check_branch
      %88 = sbr.rel (0) target = $region45
    $region44: #{dummy_module_forward.1} parent=1 // pred_region
      %89 = dma.done [#allocation8], 16
    $region45: #{dummy_module_forward.1} parent=1 // pred_fallthru
      _
    // Predicated region
    $region46: #{dummy_module_forward.1} parent=1 // pred_check
      _
    $region47: #{dummy_module_forward.1} parent=1 // pred_check_branch
      %91 = sbr.rel (0) target = $region49
    $region48: #{dummy_module_forward.1} parent=1 // pred_region
      %92 = dma.done [#allocation8], 128
    $region49: #{dummy_module_forward.1} parent=1 // pred_fallthru
      _
    // Predicated region
    $region50: #{dummy_module_forward.1} parent=1 // pred_check
      _
    $region51: #{dummy_module_forward.1} parent=1 // pred_check_branch
      %94 = sbr.rel (0) target = $region53
    $region52: #{dummy_module_forward.1} parent=1 // pred_region
      %95 = dma.done [#allocation11], 16
    $region53: #{dummy_module_forward.1} parent=1 // pred_fallthru
      _
    %96 = sfence
    %v97 = vld [vmem:[%s0] sm:$0x1]
    %v98 = vld [vmem:[%s0 + $0x1] sm:$0x1]
    %v99 = vld [vmem:[%s0 + $0x2] sm:$0x1]
    %v100 = vld [vmem:[%s0 + $0x3] sm:$0x1]
    %s101 = sld [smem:[#allocation2]]
    %v102 = vstv %s101
    %v103 = vmul.f32 %v97, %v102
    %s104 = sld [smem:[#allocation2 + $0x1]]
    %v105 = vstv %s104
    %v106 = vmul.f32 %v98, %v105
    %v107 = vadd.f32 %v103, %v106
    %s108 = sld [smem:[#allocation2 + $0x2]]
    %v109 = vstv %s108
    %v110 = vmul.f32 %v99, %v109
    %v111 = vadd.f32 %v107, %v110
    %s112 = sld [smem:[#allocation2 + $0x3]]
    %v113 = vstv %s112
    %v114 = vmul.f32 %v100, %v113
    %v115 = vadd.f32 %v111, %v114
    %s116 = sld [smem:[#allocation4]]
    %v117 = vstv %s116
    %v118 = vadd.f32 %v115, %v117
    %s119 = sld [smem:[#allocation2 + $0x80]]
    %v120 = vstv %s119
    %v121 = vmul.f32 %v97, %v120
    %s122 = sld [smem:[#allocation2 + $0x81]]
    %v123 = vstv %s122
    %v124 = vmul.f32 %v98, %v123
    %v125 = vadd.f32 %v121, %v124
    %s126 = sld [smem:[#allocation2 + $0x82]]
    %v127 = vstv %s126
    %v128 = vmul.f32 %v99, %v127
    %v129 = vadd.f32 %v125, %v128
    %s130 = sld [smem:[#allocation2 + $0x83]]
    %v131 = vstv %s130
    %v132 = vmul.f32 %v100, %v131
    %v133 = vadd.f32 %v129, %v132
    %s134 = sld [smem:[#allocation4 + $0x1]]
    %v135 = vstv %s134
    %v136 = vadd.f32 %v133, %v135
    %s137 = sld [smem:[#allocation2 + $0x100]]
    %v138 = vstv %s137
    %v139 = vmul.f32 %v97, %v138
    %s140 = sld [smem:[#allocation2 + $0x101]]
    %v141 = vstv %s140
    %v142 = vmul.f32 %v98, %v141
    %v143 = vadd.f32 %v139, %v142
    %s144 = sld [smem:[#allocation2 + $0x102]]
    %v145 = vstv %s144
    %v146 = vmul.f32 %v99, %v145
    %v147 = vadd.f32 %v143, %v146
    %s148 = sld [smem:[#allocation2 + $0x103]]
    %v149 = vstv %s148
    %v150 = vmul.f32 %v100, %v149
    %v151 = vadd.f32 %v147, %v150
    %s152 = sld [smem:[#allocation4 + $0x2]]
    %v153 = vstv %s152
    %v154 = vadd.f32 %v151, %v153
    %v155 = vadd.f32 %v118, %v136
    %v156 = vadd.f32 %v155, %v154
    %v157 = vmul.f32 %v156, 0.33333334
    %v158 = vsub.f32 %v118, %v157
    %v159 = vsub.f32 %v136, %v157
    %v160 = vsub.f32 %v154, %v157
    %v161 = vmul.f32 %v158, %v158
    %v162 = vmul.f32 %v159, %v159
    %v163 = vadd.f32 %v161, %v162
    %v164 = vmul.f32 %v160, %v160
    %v165 = vadd.f32 %v163, %v164
    %v166 = vmul.f32 %v165, 0.33333334
    %v167 = vadd.f32 %v166, 1e-05
    %v168 = vrsqrt.pop %v167
    %v169 = vmul.f32 %v158, %v168
    %v170 = vmul.f32 %v159, %v168
    %v171 = vmul.f32 %v160, %v168
    %s172 = sld [smem:[#allocation9]]
    %s173 = sld [smem:[#allocation6]]
    %s174 = smul.f32 %s172, %s173
    %v175 = vstv %s174
    %v176 = vmul.f32 %v169, %v175
    %s177 = sld [smem:[#allocation10]]
    %s178 = sld [smem:[#allocation7]]
    %s179 = smul.f32 %s172, %s178
    %s180 = sadd.f32 %s177, %s179
    %s181 = sld [smem:[#allocation9 + $0x1]]
    %s182 = sld [smem:[#allocation6 + $0x1]]
    %s183 = smul.f32 %s181, %s182
    %v184 = vstv %s183
    %v185 = vmul.f32 %v170, %v184
    %v186 = vadd.f32 %v176, %v185
    %s187 = sld [smem:[#allocation7 + $0x1]]
    %s188 = smul.f32 %s181, %s187
    %s189 = sadd.f32 %s180, %s188
    %s190 = sld [smem:[#allocation9 + $0x2]]
    %s191 = sld [smem:[#allocation6 + $0x2]]
    %s192 = smul.f32 %s190, %s191
    %v193 = vstv %s192
    %v194 = vmul.f32 %v171, %v193
    %v195 = vadd.f32 %v186, %v194
    %s196 = sld [smem:[#allocation7 + $0x2]]
    %s197 = smul.f32 %s190, %s196
    %s198 = sadd.f32 %s189, %s197
    %v199 = vstv %s198
    %v200 = vadd.f32 %v195, %v199
    %201 = vst [vmem:[%s7] sm:$0x1] %v200
    %s202 = sld [smem:[#allocation9 + $0x80]]
    %s203 = sld [smem:[#allocation6]]
    %s204 = smul.f32 %s202, %s203
    %v205 = vstv %s204
    %v206 = vmul.f32 %v169, %v205
    %s207 = sld [smem:[#allocation10 + $0x1]]
    %s208 = sld [smem:[#allocation7]]
    %s209 = smul.f32 %s202, %s208
    %s210 = sadd.f32 %s207, %s209
    %s211 = sld [smem:[#allocation9 + $0x81]]
    %s212 = sld [smem:[#allocation6 + $0x1]]
    %s213 = smul.f32 %s211, %s212
    %v214 = vstv %s213
    %v215 = vmul.f32 %v170, %v214
    %v216 = vadd.f32 %v206, %v215
    %s217 = sld [smem:[#allocation7 + $0x1]]
    %s218 = smul.f32 %s211, %s217
    %s219 = sadd.f32 %s210, %s218
    %s220 = sld [smem:[#allocation9 + $0x82]]
    %s221 = sld [smem:[#allocation6 + $0x2]]
    %s222 = smul.f32 %s220, %s221
    %v223 = vstv %s222
    %v224 = vmul.f32 %v171, %v223
    %v225 = vadd.f32 %v216, %v224
    %s226 = sld [smem:[#allocation7 + $0x2]]
    %s227 = smul.f32 %s220, %s226
    %s228 = sadd.f32 %s219, %s227
    %v229 = vstv %s228
    %v230 = vadd.f32 %v225, %v229
    %231 = vst [vmem:[%s7 + $0x1] sm:$0x1] %v230
    %s232 = sld [smem:[#allocation9 + $0x100]]
    %s233 = sld [smem:[#allocation6]]
    %s234 = smul.f32 %s232, %s233
    %v235 = vstv %s234
    %v236 = vmul.f32 %v169, %v235
    %s237 = sld [smem:[#allocation10 + $0x2]]
    %s238 = sld [smem:[#allocation7]]
    %s239 = smul.f32 %s232, %s238
    %s240 = sadd.f32 %s237, %s239
    %s241 = sld [smem:[#allocation9 + $0x101]]
    %s242 = sld [smem:[#allocation6 + $0x1]]
    %s243 = smul.f32 %s241, %s242
    %v244 = vstv %s243
    %v245 = vmul.f32 %v170, %v244
    %v246 = vadd.f32 %v236, %v245
    %s247 = sld [smem:[#allocation7 + $0x1]]
    %s248 = smul.f32 %s241, %s247
    %s249 = sadd.f32 %s240, %s248
    %s250 = sld [smem:[#allocation9 + $0x102]]
    %s251 = sld [smem:[#allocation6 + $0x2]]
    %s252 = smul.f32 %s250, %s251
    %v253 = vstv %s252
    %v254 = vmul.f32 %v171, %v253
    %v255 = vadd.f32 %v246, %v254
    %s256 = sld [smem:[#allocation7 + $0x2]]
    %s257 = smul.f32 %s250, %s256
    %s258 = sadd.f32 %s249, %s257
    %v259 = vstv %s258
    %v260 = vadd.f32 %v255, %v259
    %261 = vst [vmem:[%s7 + $0x2] sm:$0x1] %v260
    %s262 = sld [smem:[#allocation9 + $0x180]]
    %s263 = sld [smem:[#allocation6]]
    %s264 = smul.f32 %s262, %s263
    %v265 = vstv %s264
    %v266 = vmul.f32 %v169, %v265
    %s267 = sld [smem:[#allocation10 + $0x3]]
    %s268 = sld [smem:[#allocation7]]
    %s269 = smul.f32 %s262, %s268
    %s270 = sadd.f32 %s267, %s269
    %s271 = sld [smem:[#allocation9 + $0x181]]
    %s272 = sld [smem:[#allocation6 + $0x1]]
    %s273 = smul.f32 %s271, %s272
    %v274 = vstv %s273
    %v275 = vmul.f32 %v170, %v274
    %v276 = vadd.f32 %v266, %v275
    %s277 = sld [smem:[#allocation7 + $0x1]]
    %s278 = smul.f32 %s271, %s277
    %s279 = sadd.f32 %s270, %s278
    %s280 = sld [smem:[#allocation9 + $0x182]]
    %s281 = sld [smem:[#allocation6 + $0x2]]
    %s282 = smul.f32 %s280, %s281
    %v283 = vstv %s282
    %v284 = vmul.f32 %v171, %v283
    %v285 = vadd.f32 %v276, %v284
    %s286 = sld [smem:[#allocation7 + $0x2]]
    %s287 = smul.f32 %s280, %s286
    %s288 = sadd.f32 %s279, %s287
    %v289 = vstv %s288
    %v290 = vadd.f32 %v285, %v289
    %291 = vst [vmem:[%s7 + $0x3] sm:$0x1] %v290
    %s292 = sld [smem:[#allocation9 + $0x200]]
    %s293 = sld [smem:[#allocation6]]
    %s294 = smul.f32 %s292, %s293
    %v295 = vstv %s294
    %v296 = vmul.f32 %v169, %v295
    %s297 = sld [smem:[#allocation10 + $0x4]]
    %s298 = sld [smem:[#allocation7]]
    %s299 = smul.f32 %s292, %s298
    %s300 = sadd.f32 %s297, %s299
    %s301 = sld [smem:[#allocation9 + $0x201]]
    %s302 = sld [smem:[#allocation6 + $0x1]]
    %s303 = smul.f32 %s301, %s302
    %v304 = vstv %s303
    %v305 = vmul.f32 %v170, %v304
    %v306 = vadd.f32 %v296, %v305
    %s307 = sld [smem:[#allocation7 + $0x1]]
    %s308 = smul.f32 %s301, %s307
    %s309 = sadd.f32 %s300, %s308
    %s310 = sld [smem:[#allocation9 + $0x202]]
    %s311 = sld [smem:[#allocation6 + $0x2]]
    %s312 = smul.f32 %s310, %s311
    %v313 = vstv %s312
    %v314 = vmul.f32 %v171, %v313
    %v315 = vadd.f32 %v306, %v314
    %s316 = sld [smem:[#allocation7 + $0x2]]
    %s317 = smul.f32 %s310, %s316
    %s318 = sadd.f32 %s309, %s317
    %v319 = vstv %s318
    %v320 = vadd.f32 %v315, %v319
    %321 = vst [vmem:[%s7 + $0x4] sm:$0x1] %v320
    // Predicated region
    $region54: #{dummy_module_forward.1} parent=1 // pred_check
      _
    $region55: #{dummy_module_forward.1} parent=1 // pred_check_branch
      %323 = sbr.rel (0) target = $region57
    $region56: #{dummy_module_forward.1} parent=1 // pred_region
      _
    $region57: #{dummy_module_forward.1} parent=1 // pred_fallthru
      _
    // Predicated region
    $region58: #{dummy_module_forward.1} parent=1 // pred_check
      _
    $region59: #{dummy_module_forward.1} parent=1 // pred_check_branch
      %325 = sbr.rel (0) target = $region61
    $region60: #{dummy_module_forward.1} parent=1 // pred_region
      _
    $region61: #{dummy_module_forward.1} parent=1 // pred_fallthru
      _
    %326 = vsyncpa [#allocation3], 1
    %327 = vsyncpa [#allocation5], 1
    %328 = vsyncpa [#allocation8], 1
    %329 = vsyncpa [#allocation11], 1

</llo_original>
